<compile_context>
chip_gen: v7x
topology: tpu7x:2x2x1
jax: 0.10.0
libtpu: 0.0.40
codegen_flags: <defaults>
</compile_context>

<pallas_src>
import math

import jax
import jax.numpy as jnp
from jax.experimental import pallas as pl
from jax.experimental.pallas import tpu as pltpu


def _round_up(x, m):
    return ((x + m - 1) // m) * m


def _elmo_mix_conv_kernel(scales_ref, r0_ref, r1_ref, wt_ref, bias_ref, out_ref):
    """out = (s0*r0 + s1*r1) @ W + bias.

    scales_ref: SMEM [2] f32        (gamma * softmax(w), resident)
    r0_ref/r1_ref: VMEM [TM, Cin]   (pipelined row tiles)
    wt_ref:        VMEM [Cin, Cout] (resident across all grid steps)
    bias_ref:      VMEM [1, Cout] f32 (resident)
    out_ref:       VMEM [TM, Cout]
    """
    s0 = scales_ref[0]
    s1 = scales_ref[1]
    # VPU mix in f32 (free filler), then a single MXU matmul with f32 accumulation.
    mixed = s0 * r0_ref[...].astype(jnp.float32) + s1 * r1_ref[...].astype(jnp.float32)
    acc = jnp.dot(mixed.astype(wt_ref.dtype), wt_ref[...],
                  preferred_element_type=jnp.float32)
    out_ref[...] = (acc + bias_ref[...]).astype(out_ref.dtype)


def elmo_layer_forward(res0, res1, w_param, gamma_param, conv_weight, conv_bias,
                       *, tm=None, out_dtype=None):
    """res0/res1: [B, T, Cin] (f32 or bf16).  Returns [B, T, Cout] in `out_dtype`
    (defaults to the input dtype)."""
    B, T, Cin = res0.shape
    Cout = conv_weight.shape[0]
    M = B * T
    in_dtype = res0.dtype
    out_dtype = in_dtype if out_dtype is None else out_dtype
    in_bytes = jnp.dtype(in_dtype).itemsize
    out_bytes = jnp.dtype(out_dtype).itemsize

    # --- tiny parameter prep (done once in the wrapper) --------------------------------
    w_soft = jax.nn.softmax(w_param.astype(jnp.float32), axis=0)            # [2]
    gamma = gamma_param.astype(jnp.float32)[0]                              # scalar
    scales = (gamma * w_soft).astype(jnp.float32)                           # [2] -> SMEM
    wt = jnp.transpose(conv_weight[:, :, 0]).astype(in_dtype)               # [Cin, Cout]
    bias = conv_bias.reshape(1, Cout).astype(jnp.float32)                   # [1, Cout]

    # Inputs: no dtype cast, no padding copies.
    r0 = res0.reshape(M, Cin)
    r1 = res1.reshape(M, Cin)

    # --- row tiling ---------------------------------------------------------------------
    # Default TM: 1024 rows (f32) / 2048 rows (bf16) -> ~16-18 MiB double-buffered inputs.
    if tm is None:
        tm = 2048 if in_bytes <= 2 else 1024
    # Cap TM so the "parallel" row-tile grid has >= 2 steps when M allows (v7x megacore).
    if M >= 16:
        tm_cap = _round_up(pl.cdiv(M, 2), 8)
    else:
        tm_cap = _round_up(max(M, 1), 8)
    TM = max(8, min(tm, tm_cap))
    grid = (pl.cdiv(M, TM),)     # ragged last block: masked output writes, row-wise op.

    cost = pl.CostEstimate(
        flops=2 * M * Cin * Cout + 3 * M * Cin,
        transcendentals=0,
        bytes_accessed=(2 * M * Cin * in_bytes          # r0, r1 reads (dominant)
                        + M * Cout * out_bytes          # output writeback
                        + Cin * Cout * in_bytes         # weight (resident)
                        + Cout * 4 + 8),                # bias + scales
    )

    out_flat = pl.pallas_call(
        _elmo_mix_conv_kernel,
        out_shape=jax.ShapeDtypeStruct((M, Cout), out_dtype),
        grid=grid,
        in_specs=[
            pl.BlockSpec(memory_space=pltpu.MemorySpace.SMEM),  # gamma*softmax(w) scalars
            pl.BlockSpec((TM, Cin), lambda i: (i, 0)),          # res0 tile (pipelined)
            pl.BlockSpec((TM, Cin), lambda i: (i, 0)),          # res1 tile (pipelined)
            pl.BlockSpec((Cin, Cout), lambda i: (0, 0)),        # W^T (VMEM-resident)
            pl.BlockSpec((1, Cout), lambda i: (0, 0)),          # bias (VMEM-resident)
        ],
        out_specs=pl.BlockSpec((TM, Cout), lambda i: (i, 0)),
        compiler_params=pltpu.CompilerParams(
            dimension_semantics=("parallel",),
            vmem_limit_bytes=40 * 1024 * 1024,
        ),
        cost_estimate=cost,
    )(scales, r0, r1, wt, bias)

    return out_flat.reshape(B, T, Cout)


def reference_forward(res0, res1, w_param, gamma_param, conv_weight, conv_bias):
    """Pure-JAX reference mirroring the PyTorch forward (f32)."""
    w = jax.nn.softmax(w_param, axis=0)
    mixed = gamma_param[0] * (w[0] * res0.astype(jnp.float32)
                              + w[1] * res1.astype(jnp.float32))             # [B, T, Cin]
    # Conv1d(kernel_size=1) on [B, Cin, T] == einsum over the channel dim.
    out = jnp.einsum("btc,oc->bto", mixed, conv_weight[:, :, 0]) + conv_bias
    return out


if __name__ == "__main__":
    key = jax.random.PRNGKey(0)
    k_res0, k_res1, k_conv = jax.random.split(key, 3)

    # Small shapes consistent with the module: ELMo reps are 1024-dim; elmo_dim = 128.
    B, T = 2, 8
    ELMO_DIM_IN = 1024
    ELMO_DIM_OUT = 128

    # Synthetic ELMo representations (stand-in for the frozen BiLM outputs).
    res0 = jax.random.normal(k_res0, (B, T, ELMO_DIM_IN), dtype=jnp.float32)
    res1 = jax.random.normal(k_res1, (B, T, ELMO_DIM_IN), dtype=jnp.float32)

    # Parameters, initialized deterministically per __init__:
    w_param = jnp.array([0.5, 0.5], dtype=jnp.float32)            # self.w
    gamma_param = jnp.ones((1,), dtype=jnp.float32)               # self.gamma
    # Conv1d(1024 -> elmo_dim, 1): xavier_uniform weight, zero bias.
    fan_in, fan_out = ELMO_DIM_IN, ELMO_DIM_OUT
    limit = math.sqrt(6.0 / (fan_in + fan_out))
    conv_weight = jax.random.uniform(
        k_conv, (ELMO_DIM_OUT, ELMO_DIM_IN, 1), dtype=jnp.float32,
        minval=-limit, maxval=limit)
    conv_bias = jnp.zeros((ELMO_DIM_OUT,), dtype=jnp.float32)

    ref = reference_forward(res0, res1, w_param, gamma_param, conv_weight, conv_bias)

    # f32 path (M=16 -> two row tiles of 8, weights stay resident across the grid).
    out = elmo_layer_forward(res0, res1, w_param, gamma_param, conv_weight, conv_bias)
    out = jax.block_until_ready(out)
    assert out.shape == (B, T, ELMO_DIM_OUT), out.shape
    assert jnp.allclose(out, ref, atol=5e-3, rtol=5e-3), \
        float(jnp.max(jnp.abs(out - ref)))

    # bf16 input path: half the HBM input traffic, native bf16 MXU, f32 accumulation.
    out_bf16 = elmo_layer_forward(
        res0.astype(jnp.bfloat16), res1.astype(jnp.bfloat16),
        w_param, gamma_param, conv_weight, conv_bias)
    out_bf16 = jax.block_until_ready(out_bf16)
    assert out_bf16.dtype == jnp.bfloat16
    assert jnp.allclose(out_bf16.astype(jnp.float32), ref, atol=3e-2, rtol=3e-2), \
        float(jnp.max(jnp.abs(out_bf16.astype(jnp.float32) - ref)))

    # Ragged last block path (no padding copies, masked output writes): M=22, TM=16.
    B2, T2 = 2, 11
    res0_r = jax.random.normal(k_res0, (B2, T2, ELMO_DIM_IN), dtype=jnp.float32)
    res1_r = jax.random.normal(k_res1, (B2, T2, ELMO_DIM_IN), dtype=jnp.float32)
    ref_r = reference_forward(res0_r, res1_r, w_param, gamma_param, conv_weight, conv_bias)
    out_r = elmo_layer_forward(res0_r, res1_r, w_param, gamma_param, conv_weight, conv_bias)
    out_r = jax.block_until_ready(out_r)
    assert out_r.shape == (B2, T2, ELMO_DIM_OUT), out_r.shape
    assert jnp.allclose(out_r, ref_r, atol=5e-3, rtol=5e-3), \
        float(jnp.max(jnp.abs(out_r - ref_r)))

    print("KERNEL_OK")
</pallas_src>

<mosaic_0001>
module attributes {stable_mosaic.version = 11 : i64} {
  func.func @_elmo_mix_conv_kernel(%arg0: i32, %arg1: memref<2xf32, #tpu.memory_space<smem>>, %arg2: memref<8x1024xf32, #tpu.memory_space<vmem>>, %arg3: memref<8x1024xf32, #tpu.memory_space<vmem>>, %arg4: memref<1024x128xf32, #tpu.memory_space<vmem>>, %arg5: memref<1x128xf32, #tpu.memory_space<vmem>>, %arg6: memref<8x128xf32, #tpu.memory_space<vmem>>) attributes {dimension_semantics = [#tpu.dimension_semantics<parallel>], iteration_bounds = array<i64: 2>, scalar_prefetch = 0 : i64, scratch_operands = 0 : i64, tpu.core_type = #tpu.core_type<tc>, window_params = [{transform_indices = @transform_0, window_bounds = array<i64: 2>}, {transform_indices = @transform_1, window_bounds = array<i64: 8, 1024>}, {transform_indices = @transform_2, window_bounds = array<i64: 8, 1024>}, {pipeline_mode = #tpu.pipeline_mode<synchronous>, transform_indices = @transform_3, window_bounds = array<i64: 1024, 128>}, {pipeline_mode = #tpu.pipeline_mode<synchronous>, transform_indices = @transform_4, window_bounds = array<i64: 1, 128>}, {transform_indices = @transform_5, window_bounds = array<i64: 8, 128>}]} {
    %c0 = arith.constant 0 : index
    %0 = memref.load %arg1[%c0] : memref<2xf32, #tpu.memory_space<smem>>
    %c1 = arith.constant 1 : index
    %1 = memref.load %arg1[%c1] : memref<2xf32, #tpu.memory_space<smem>>
    %c0_0 = arith.constant 0 : index
    %c0_1 = arith.constant 0 : index
    %2 = vector.load %arg2[%c0_0, %c0_1] : memref<8x1024xf32, #tpu.memory_space<vmem>>, vector<8x1024xf32>
    %3 = vector.broadcast %0 : f32 to vector<8x1024xf32>
    %4 = arith.mulf %3, %2 : vector<8x1024xf32>
    %c0_2 = arith.constant 0 : index
    %c0_3 = arith.constant 0 : index
    %5 = vector.load %arg3[%c0_2, %c0_3] : memref<8x1024xf32, #tpu.memory_space<vmem>>, vector<8x1024xf32>
    %6 = vector.broadcast %1 : f32 to vector<8x1024xf32>
    %7 = arith.mulf %6, %5 : vector<8x1024xf32>
    %8 = arith.addf %4, %7 : vector<8x1024xf32>
    %c0_4 = arith.constant 0 : index
    %c0_5 = arith.constant 0 : index
    %9 = vector.load %arg4[%c0_4, %c0_5] : memref<1024x128xf32, #tpu.memory_space<vmem>>, vector<1024x128xf32>
    %cst = arith.constant dense<0.000000e+00> : vector<8x128xf32>
    %10 = tpu.matmul %8, %9, %cst {dimension_numbers = #tpu.dot_dimension_numbers<[1], [0], [0], [1], [0, 0, 1, 1], [], []>} : vector<8x1024xf32>, vector<1024x128xf32>, vector<8x128xf32> -> vector<8x128xf32>
    %c0_6 = arith.constant 0 : index
    %c0_7 = arith.constant 0 : index
    %11 = vector.load %arg5[%c0_6, %c0_7] : memref<1x128xf32, #tpu.memory_space<vmem>>, vector<1x128xf32>
    %12 = vector.broadcast %11 : vector<1x128xf32> to vector<8x128xf32>
    %13 = arith.addf %10, %12 : vector<8x128xf32>
    %c0_8 = arith.constant 0 : index
    %c0_9 = arith.constant 0 : index
    %14 = vector.load %arg6[%c0_8, %c0_9] : memref<8x128xf32, #tpu.memory_space<vmem>>, vector<8x128xf32>
    tpu.vector_store %arg6[%c0_8, %c0_9], %13 {strides = array<i32>} : memref<8x128xf32, #tpu.memory_space<vmem>>, vector<8x128xf32>,
    return
  }
  func.func @transform_0(%arg0: i32) -> i32 {
    %c0_i32 = arith.constant 0 : i32
    %c0_i32_0 = arith.constant 0 : i32
    return %c0_i32 : i32
  }
  func.func @transform_1(%arg0: i32) -> (i32, i32) {
    %c0_i32 = arith.constant 0 : i32
    %c0_i32_0 = arith.constant 0 : i32
    return %arg0, %c0_i32 : i32, i32
  }
  func.func @transform_2(%arg0: i32) -> (i32, i32) {
    %c0_i32 = arith.constant 0 : i32
    %c0_i32_0 = arith.constant 0 : i32
    return %arg0, %c0_i32 : i32, i32
  }
  func.func @transform_3(%arg0: i32) -> (i32, i32) {
    %c0_i32 = arith.constant 0 : i32
    %c0_i32_0 = arith.constant 0 : i32
    %c0_i32_1 = arith.constant 0 : i32
    return %c0_i32, %c0_i32_0 : i32, i32
  }
  func.func @transform_4(%arg0: i32) -> (i32, i32) {
    %c0_i32 = arith.constant 0 : i32
    %c0_i32_0 = arith.constant 0 : i32
    %c0_i32_1 = arith.constant 0 : i32
    return %c0_i32, %c0_i32_0 : i32, i32
  }
  func.func @transform_5(%arg0: i32) -> (i32, i32) {
    %c0_i32 = arith.constant 0 : i32
    %c0_i32_0 = arith.constant 0 : i32
    return %arg0, %c0_i32 : i32, i32
  }
}

</mosaic_0001>

<llo_original>
// kernel: tpu_custom_call.1
$region0: #{tpu_custom_call.1}
  #allocation0 [shape = 'u32[]', space=smem, size = 0x4, offset = 0x4, fixed_abs, tag = 'smem constant byte address 0x4 - core index']
  #allocation1 [shape = 'u32[144,128]{1,0:T(1,128)}', space=vmem, size = 0x12000, scoped, tag = 'internal scratch']
  %s0 = inlined_call_operand.hbm [shape: f32[2], index: 0, kind: input, shape index: {}]
  %s1 = inlined_call_operand.hbm [shape: f32[16,1024], index: 1, kind: input, shape index: {}]
  %s2 = inlined_call_operand.hbm [shape: f32[16,1024], index: 2, kind: input, shape index: {}]
  %s3 = inlined_call_operand.hbm [shape: f32[1024,128], index: 3, kind: input, shape index: {}]
  %s4 = inlined_call_operand.vmem [shape: f32[1,128], index: 4, kind: input, shape index: {}]
  %s5 = inlined_call_operand.hbm [shape: f32[16,128], index: 5, kind: output, shape index: {}]
  %s6 = sld [smem:[#allocation0]]
  $region69: #{tpu_custom_call.1} parent=0
    _
  %s8 = ssub.s32 1, %s6
  %s9 = scalar_select 0, %s8, %s6
  $region1: #{tpu_custom_call.1} parent=0
    #allocation2 [shape = 'u8[512]{0}', space=smem, size = 0x200, scoped, tag = 'input window, operand 0, single buffered']
    #allocation3 [shape = 's32[2]{0}', space=sflag, size = 0x8, scoped, tag = 'scoped memory for tpu_custom_call.1']
    #allocation4 [shape = 's32[2]{0}', space=sflag, size = 0x8, scoped, tag = 'scoped memory for tpu_custom_call.1']
    #allocation5 [shape = 's32[2]{0}', space=sflag, size = 0x8, scoped, tag = 'scoped memory for tpu_custom_call.1']
    #allocation6 [shape = 'u8[65536]{0}', space=vmem, size = 0x10000, scoped, tag = 'input window, operand 1']
    #allocation7 [shape = 'u8[65536]{0}', space=vmem, size = 0x10000, scoped, tag = 'input window, operand 2']
    #allocation8 [shape = 's32[2]{0}', space=sflag, size = 0x8, scoped, tag = 'scoped memory for tpu_custom_call.1']
    #allocation9 [shape = 'u8[524288]{0}', space=vmem, size = 0x80000, scoped, tag = 'input window, operand 3, single buffered']
    #allocation10 [shape = 'u8[8192]{0}', space=vmem, size = 0x2000, scoped, tag = 'output window, operand 0']
    %10 = vsyncpa [#allocation5], 0
    %11 = vsyncpa [#allocation3], 0
    %s12 = scalar_lea.sflag [#allocation3], 1
    %13 = vsyncpa %s12, 0
    %14 = vsyncpa [#allocation8], 0
    %s15 = scalar_lea.sflag [#allocation8], 1
    %16 = vsyncpa %s15, 0
    %17 = vsyncpa [#allocation4], 0
    %s18 = scalar_lea.sflag [#allocation4], 1
    %19 = vsyncpa %s18, 0
    loop: start=0, step=1, limit=4
    $region2: #{tpu_custom_call.1} parent=1 // loop_pre_header
      _
    $region3: #{tpu_custom_call.1} parent=1 // loop_header
      %s21 = sphi 0, %s25
      %p22 = scmp.ge.s32.totalorder %s21, 4
      %s29 = sphi 0, %s29
      %s31 = sphi 0, %s29
      %s32 = sphi 0, %s31
      %s46 = sphi 0, %s32
      %s52 = sphi 0, %s54
      %s55 = sphi 0, %s52
      %s56 = sphi 0, %s55
      %s72 = sphi 0, %s56
      %s78 = sphi 0, %s80
      %s81 = sphi 0, %s78
      %s82 = sphi 0, %s81
      %s98 = sphi 0, %s82
      %s102 = sphi 0, %s102
      %s104 = sphi 0, %s102
      %s105 = sphi 0, %s104
      %s119 = sphi 0, %s105
      %s123 = sphi 0, %s123
      %s125 = sphi 0, %s123
      %s126 = sphi 0, %s125
      %s140 = sphi 0, %s126
      %s146 = sphi 0, %s148
      %s149 = sphi 0, %s146
      %s150 = sphi 0, %s149
      %s166 = sphi 0, %s150
    $region4: #{tpu_custom_call.1} parent=1 // loop_header_branch
      %24 = sbr.rel (%p22) target = $region8
    $region5: #{tpu_custom_call.1} parent=1 // loop_body
      %s26 = ssub.s32 %s21, 1
      %s27 = ssub.s32 %s21, 2
      %s28 = sadd.s32 %s21, 1
      %s30 = sadd.s32 %s29, 1
      %p33 = scmp.eq.s32.totalorder %s21, 1
      %p34 = scmp.ne.s32.totalorder %s29, %s31
      %p35 = scmp.eq.s32.totalorder %s21, 0
      %p36 = por %p34, %p35
      %p37 = scmp.ne.s32.totalorder %s29, %s31
      %p38 = scmp.eq.s32.totalorder %s26, 1
      %p39 = por %p37, %p38
      %p40 = scmp.ne.s32.totalorder %s31, %s32
      %p41 = scmp.eq.s32.totalorder %s26, 0
      %p42 = por %p40, %p41
      %p43 = scmp.ne.s32.totalorder %s31, %s32
      %p44 = scmp.eq.s32.totalorder %s27, 1
      %p45 = por %p43, %p44
      %p47 = scmp.ne.s32.totalorder %s32, %s46
      %p48 = scmp.eq.s32.totalorder %s27, 0
      %p49 = por %p47, %p48
      %s50 = ssub.s32 %s21, %s28
      %p51 = scmp.eq.s32.totalorder %s50, 0
      %s53 = sadd.s32 %s52, 1
      %s54 = scalar_select %p51, %s52, %s53
      %p57 = pneg %p51
      %p58 = scmp.eq.s32.totalorder %s21, 1
      %p59 = por %p57, %p58
      %p60 = scmp.ne.s32.totalorder %s52, %s55
      %p61 = scmp.eq.s32.totalorder %s21, 0
      %p62 = por %p60, %p61
      %p63 = scmp.ne.s32.totalorder %s52, %s55
      %p64 = scmp.eq.s32.totalorder %s26, 1
      %p65 = por %p63, %p64
      %p66 = scmp.ne.s32.totalorder %s55, %s56
      %p67 = scmp.eq.s32.totalorder %s26, 0
      %p68 = por %p66, %p67
      %p69 = scmp.ne.s32.totalorder %s55, %s56
      %p70 = scmp.eq.s32.totalorder %s27, 1
      %p71 = por %p69, %p70
      %p73 = scmp.ne.s32.totalorder %s56, %s72
      %p74 = scmp.eq.s32.totalorder %s27, 0
      %p75 = por %p73, %p74
      %s76 = ssub.s32 %s21, %s28
      %p77 = scmp.eq.s32.totalorder %s76, 0
      %s79 = sadd.s32 %s78, 1
      %s80 = scalar_select %p77, %s78, %s79
      %p83 = pneg %p77
      %p84 = scmp.eq.s32.totalorder %s21, 1
      %p85 = por %p83, %p84
      %p86 = scmp.ne.s32.totalorder %s78, %s81
      %p87 = scmp.eq.s32.totalorder %s21, 0
      %p88 = por %p86, %p87
      %p89 = scmp.ne.s32.totalorder %s78, %s81
      %p90 = scmp.eq.s32.totalorder %s26, 1
      %p91 = por %p89, %p90
      %p92 = scmp.ne.s32.totalorder %s81, %s82
      %p93 = scmp.eq.s32.totalorder %s26, 0
      %p94 = por %p92, %p93
      %p95 = scmp.ne.s32.totalorder %s81, %s82
      %p96 = scmp.eq.s32.totalorder %s27, 1
      %p97 = por %p95, %p96
      %p99 = scmp.ne.s32.totalorder %s82, %s98
      %p100 = scmp.eq.s32.totalorder %s27, 0
      %p101 = por %p99, %p100
      %s103 = sadd.s32 %s102, 1
      %p106 = scmp.eq.s32.totalorder %s21, 1
      %p107 = scmp.ne.s32.totalorder %s102, %s104
      %p108 = scmp.eq.s32.totalorder %s21, 0
      %p109 = por %p107, %p108
      %p110 = scmp.ne.s32.totalorder %s102, %s104
      %p111 = scmp.eq.s32.totalorder %s26, 1
      %p112 = por %p110, %p111
      %p113 = scmp.ne.s32.totalorder %s104, %s105
      %p114 = scmp.eq.s32.totalorder %s26, 0
      %p115 = por %p113, %p114
      %p116 = scmp.ne.s32.totalorder %s104, %s105
      %p117 = scmp.eq.s32.totalorder %s27, 1
      %p118 = por %p116, %p117
      %p120 = scmp.ne.s32.totalorder %s105, %s119
      %p121 = scmp.eq.s32.totalorder %s27, 0
      %p122 = por %p120, %p121
      %s124 = sadd.s32 %s123, 1
      %p127 = scmp.eq.s32.totalorder %s21, 1
      %p128 = scmp.ne.s32.totalorder %s123, %s125
      %p129 = scmp.eq.s32.totalorder %s21, 0
      %p130 = por %p128, %p129
      %p131 = scmp.ne.s32.totalorder %s123, %s125
      %p132 = scmp.eq.s32.totalorder %s26, 1
      %p133 = por %p131, %p132
      %p134 = scmp.ne.s32.totalorder %s125, %s126
      %p135 = scmp.eq.s32.totalorder %s26, 0
      %p136 = por %p134, %p135
      %p137 = scmp.ne.s32.totalorder %s125, %s126
      %p138 = scmp.eq.s32.totalorder %s27, 1
      %p139 = por %p137, %p138
      %p141 = scmp.ne.s32.totalorder %s126, %s140
      %p142 = scmp.eq.s32.totalorder %s27, 0
      %p143 = por %p141, %p142
      %s144 = ssub.s32 %s21, %s28
      %p145 = scmp.eq.s32.totalorder %s144, 0
      %s147 = sadd.s32 %s146, 1
      %s148 = scalar_select %p145, %s146, %s147
      %p151 = pneg %p145
      %p152 = scmp.eq.s32.totalorder %s21, 1
      %p153 = por %p151, %p152
      %p154 = scmp.ne.s32.totalorder %s146, %s149
      %p155 = scmp.eq.s32.totalorder %s21, 0
      %p156 = por %p154, %p155
      %p157 = scmp.ne.s32.totalorder %s146, %s149
      %p158 = scmp.eq.s32.totalorder %s26, 1
      %p159 = por %p157, %p158
      %p160 = scmp.ne.s32.totalorder %s149, %s150
      %p161 = scmp.eq.s32.totalorder %s26, 0
      %p162 = por %p160, %p161
      %p163 = scmp.ne.s32.totalorder %s149, %s150
      %p164 = scmp.eq.s32.totalorder %s27, 1
      %p165 = por %p163, %p164
      %p167 = scmp.ne.s32.totalorder %s150, %s166
      %p168 = scmp.eq.s32.totalorder %s27, 0
      %p169 = por %p167, %p168
      %p170 = scmp.le.s32.totalorder 1, %s21
      %p171 = scmp.lt.s32.totalorder %s21, 3
      %p172 = pnand %p170, %p171
      %p173 = pneg %p172
      // Predicated region
      $region9: #{tpu_custom_call.1} parent=5 // pred_check
        _
      $region10: #{tpu_custom_call.1} parent=5 // pred_check_branch
        %175 = sbr.rel (%p172) target = $region12
      $region11: #{tpu_custom_call.1} parent=5 // pred_region
        %s176 = ssub.s32 %s21, 1
        // Predicated region
        $region13: #{tpu_custom_call.1} parent=11 // pred_check
          %p177 = pneg %p42
        $region14: #{tpu_custom_call.1} parent=11 // pred_check_branch
          %179 = sbr.rel (%p177) target = $region16
        $region15: #{tpu_custom_call.1} parent=11 // pred_region
          %s181 = ssub.s32 16, 16
          %182 = vsyncadd [#allocation5], %s181
          %185 = dma.hbm_to_smem %s0, 16, [#allocation2], [#allocation5]
        $region16: #{tpu_custom_call.1} parent=11 // pred_fallthru
          _
        // Predicated region
        $region17: #{tpu_custom_call.1} parent=11 // pred_check
          %p186 = pneg %p115
        $region18: #{tpu_custom_call.1} parent=11 // pred_check_branch
          %188 = sbr.rel (%p186) target = $region20
        $region19: #{tpu_custom_call.1} parent=11 // pred_region
          %s190 = ssub.s32 16384, 16384
          %191 = vsyncadd [#allocation8], %s190
          %s192 = sshll.u32 [#allocation9], 4
          %s193 = int_to_ptr.vmem [resolvable:$true] %s192
          %198 = dma.hbm_to_vmem [thread:$0]  %s3, 16384, %s193, [#allocation8], 128, 128, 8
        $region20: #{tpu_custom_call.1} parent=11 // pred_fallthru
          _
        // Predicated region
        $region21: #{tpu_custom_call.1} parent=11 // pred_check
          %p199 = pneg %p136
        $region22: #{tpu_custom_call.1} parent=11 // pred_check_branch
          %201 = sbr.rel (%p199) target = $region24
        $region23: #{tpu_custom_call.1} parent=11 // pred_region
          _
        $region24: #{tpu_custom_call.1} parent=11 // pred_fallthru
          _
      $region12: #{tpu_custom_call.1} parent=5 // pred_fallthru
        _
      %p202 = scmp.lt.s32.totalorder %s21, 2
      // Predicated region
      $region25: #{tpu_custom_call.1} parent=5 // pred_check
        %p203 = pneg %p202
      $region26: #{tpu_custom_call.1} parent=5 // pred_check_branch
        %205 = sbr.rel (%p203) target = $region28
      $region27: #{tpu_custom_call.1} parent=5 // pred_region
        // Predicated region
        $region29: #{tpu_custom_call.1} parent=27 // pred_check
          %p206 = pneg %p62
        $region30: #{tpu_custom_call.1} parent=27 // pred_check_branch
          %208 = sbr.rel (%p206) target = $region32
        $region31: #{tpu_custom_call.1} parent=27 // pred_region
          %s209 = sand.u32 %s52, 1
          %s210 = scalar_lea.sflag [#allocation3], %s209
          %s211 = sand.u32 %s52, 1
          %s212 = smul.addr %s211, 64
          %s213 = scalar_lea.vmem [#allocation6], %s212
          %s215 = ssub.s32 1024, 1024
          %216 = vsyncadd %s210, %s215
          %s217 = smul.addr %s21, 8
          %s218 = smul.addr %s217, 128
          %s219 = scalar_lea.hbm %s1, %s218
          %s221 = sshll.u32 %s213, 4
          %s222 = int_to_ptr.vmem [resolvable:$true] %s221
          %224 = dma.hbm_to_vmem [thread:$0]  %s219, 1024, %s222, %s210
        $region32: #{tpu_custom_call.1} parent=27 // pred_fallthru
          _
        // Predicated region
        $region33: #{tpu_custom_call.1} parent=27 // pred_check
          %p225 = pneg %p88
        $region34: #{tpu_custom_call.1} parent=27 // pred_check_branch
          %227 = sbr.rel (%p225) target = $region36
        $region35: #{tpu_custom_call.1} parent=27 // pred_region
          %s228 = sand.u32 %s21, 1
          %s229 = scalar_lea.sflag [#allocation8], %s228
          %s230 = sand.u32 %s78, 1
          %s231 = smul.addr %s230, 64
          %s232 = scalar_lea.vmem [#allocation7], %s231
          %s234 = ssub.s32 1024, 1024
          %235 = vsyncadd %s229, %s234
          %s236 = smul.addr %s21, 8
          %s237 = smul.addr %s236, 128
          %s238 = scalar_lea.hbm %s2, %s237
          %s240 = sshll.u32 %s232, 4
          %s241 = int_to_ptr.vmem [resolvable:$true] %s240
          %243 = dma.hbm_to_vmem [thread:$0]  %s238, 1024, %s241, %s229
        $region36: #{tpu_custom_call.1} parent=27 // pred_fallthru
          _
      $region28: #{tpu_custom_call.1} parent=5 // pred_fallthru
        _
      %p244 = scmp.le.s32.totalorder 1, %s21
      %p245 = scmp.lt.s32.totalorder %s21, 3
      %p246 = pnand %p244, %p245
      %p247 = pneg %p246
      // Predicated region
      $region37: #{tpu_custom_call.1} parent=5 // pred_check
        _
      $region38: #{tpu_custom_call.1} parent=5 // pred_check_branch
        %249 = sbr.rel (%p246) target = $region40
      $region39: #{tpu_custom_call.1} parent=5 // pred_region
        %s250 = ssub.s32 %s21, 1
        // Predicated region
        $region41: #{tpu_custom_call.1} parent=39 // pred_check
          %p251 = pneg %p42
        $region42: #{tpu_custom_call.1} parent=39 // pred_check_branch
          %253 = sbr.rel (%p251) target = $region44
        $region43: #{tpu_custom_call.1} parent=39 // pred_region
          %254 = dma.done [#allocation5], 16
        $region44: #{tpu_custom_call.1} parent=39 // pred_fallthru
          _
        %s255 = sand.u32 %s55, 1
        %s256 = scalar_lea.sflag [#allocation3], %s255
        %s257 = sand.u32 %s55, 1
        %s258 = smul.addr %s257, 64
        %s259 = scalar_lea.vmem [#allocation6], %s258
        // Predicated region
        $region45: #{tpu_custom_call.1} parent=39 // pred_check
          %p260 = pneg %p68
        $region46: #{tpu_custom_call.1} parent=39 // pred_check_branch
          %262 = sbr.rel (%p260) target = $region48
        $region47: #{tpu_custom_call.1} parent=39 // pred_region
          %263 = dma.done %s256, 1024
        $region48: #{tpu_custom_call.1} parent=39 // pred_fallthru
          _
        %s264 = sand.u32 %s26, 1
        %s265 = scalar_lea.sflag [#allocation8], %s264
        %s266 = sand.u32 %s81, 1
        %s267 = smul.addr %s266, 64
        %s268 = scalar_lea.vmem [#allocation7], %s267
        // Predicated region
        $region49: #{tpu_custom_call.1} parent=39 // pred_check
          %p269 = pneg %p94
        $region50: #{tpu_custom_call.1} parent=39 // pred_check_branch
          %271 = sbr.rel (%p269) target = $region52
        $region51: #{tpu_custom_call.1} parent=39 // pred_region
          %272 = dma.done %s265, 1024
        $region52: #{tpu_custom_call.1} parent=39 // pred_fallthru
          _
        // Predicated region
        $region53: #{tpu_custom_call.1} parent=39 // pred_check
          %p273 = pneg %p115
        $region54: #{tpu_custom_call.1} parent=39 // pred_check_branch
          %275 = sbr.rel (%p273) target = $region56
        $region55: #{tpu_custom_call.1} parent=39 // pred_region
          %276 = dma.done [#allocation8], 16384
        $region56: #{tpu_custom_call.1} parent=39 // pred_fallthru
          _
        %277 = sfence
        %p278 = pneg %p42
        %p279 = pneg %p39
        %s280 = sand.u32 %s55, 1
        %s281 = scalar_lea.sflag [#allocation3], %s280
        %s282 = sand.u32 %s55, 1
        %s283 = smul.addr %s282, 64
        %s284 = scalar_lea.vmem [#allocation6], %s283
        %p285 = pneg %p68
        %p286 = pneg %p65
        %s287 = sand.u32 %s26, 1
        %s288 = scalar_lea.sflag [#allocation8], %s287
        %s289 = sand.u32 %s81, 1
        %s290 = smul.addr %s289, 64
        %s291 = scalar_lea.vmem [#allocation7], %s290
        %p292 = pneg %p94
        %p293 = pneg %p91
        %p294 = pneg %p115
        %p295 = pneg %p112
        %p296 = pneg %p136
        %p297 = pneg %p133
        %p298 = pneg %p162
        %p299 = pneg %p159
        %s300 = sand.u32 %s149, 1
        %s301 = scalar_lea.sflag [#allocation4], %s300
        %s302 = sand.u32 %s149, 1
        %s303 = smul.addr %s302, 8
        %s304 = scalar_lea.vmem [#allocation10], %s303
        %s305 = sld [smem:[#allocation2]]
        %s306 = sld [smem:[#allocation2 + $0x1]]
        %v307 = vld [vmem:[%s259] sm:$0xff]
        %v308 = vld [vmem:[%s259 + $0x8] sm:$0xff]
        %v309 = vld [vmem:[%s259 + $0x10] sm:$0xff]
        %v310 = vld [vmem:[%s259 + $0x18] sm:$0xff]
        %v311 = vld [vmem:[%s259 + $0x20] sm:$0xff]
        %v312 = vld [vmem:[%s259 + $0x28] sm:$0xff]
        %v313 = vld [vmem:[%s259 + $0x30] sm:$0xff]
        %v314 = vld [vmem:[%s259 + $0x38] sm:$0xff]
        %v315 = vstv %s305
        %v316 = vmul.f32 %v315, %v307
        %v317 = vmul.f32 %v315, %v308
        %v318 = vmul.f32 %v315, %v309
        %v319 = vmul.f32 %v315, %v310
        %v320 = vmul.f32 %v315, %v311
        %v321 = vmul.f32 %v315, %v312
        %v322 = vmul.f32 %v315, %v313
        %v323 = vmul.f32 %v315, %v314
        %v324 = vld [vmem:[%s268] sm:$0xff]
        %v325 = vld [vmem:[%s268 + $0x8] sm:$0xff]
        %v326 = vld [vmem:[%s268 + $0x10] sm:$0xff]
        %v327 = vld [vmem:[%s268 + $0x18] sm:$0xff]
        %v328 = vld [vmem:[%s268 + $0x20] sm:$0xff]
        %v329 = vld [vmem:[%s268 + $0x28] sm:$0xff]
        %v330 = vld [vmem:[%s268 + $0x30] sm:$0xff]
        %v331 = vld [vmem:[%s268 + $0x38] sm:$0xff]
        %v332 = vstv %s306
        %v333 = vmul.f32 %v332, %v324
        %v334 = vmul.f32 %v332, %v325
        %v335 = vmul.f32 %v332, %v326
        %v336 = vmul.f32 %v332, %v327
        %v337 = vmul.f32 %v332, %v328
        %v338 = vmul.f32 %v332, %v329
        %v339 = vmul.f32 %v332, %v330
        %v340 = vmul.f32 %v332, %v331
        %v341 = vadd.f32 %v316, %v333
        %v342 = vadd.f32 %v317, %v334
        %v343 = vadd.f32 %v318, %v335
        %v344 = vadd.f32 %v319, %v336
        %v345 = vadd.f32 %v320, %v337
        %v346 = vadd.f32 %v321, %v338
        %v347 = vadd.f32 %v322, %v339
        %v348 = vadd.f32 %v323, %v340
        %v349 = vld [vmem:[#allocation9] sm:$0xff]
        %v350 = vld [vmem:[#allocation9 + $0x8] sm:$0xff]
        %v351 = vld [vmem:[#allocation9 + $0x10] sm:$0xff]
        %v352 = vld [vmem:[#allocation9 + $0x18] sm:$0xff]
        %v353 = vld [vmem:[#allocation9 + $0x20] sm:$0xff]
        %v354 = vld [vmem:[#allocation9 + $0x28] sm:$0xff]
        %v355 = vld [vmem:[#allocation9 + $0x30] sm:$0xff]
        %v356 = vld [vmem:[#allocation9 + $0x38] sm:$0xff]
        %v357 = vld [vmem:[#allocation9 + $0x40] sm:$0xff]
        %v358 = vld [vmem:[#allocation9 + $0x48] sm:$0xff]
        %v359 = vld [vmem:[#allocation9 + $0x50] sm:$0xff]
        %v360 = vld [vmem:[#allocation9 + $0x58] sm:$0xff]
        %v361 = vld [vmem:[#allocation9 + $0x60] sm:$0xff]
        %v362 = vld [vmem:[#allocation9 + $0x68] sm:$0xff]
        %v363 = vld [vmem:[#allocation9 + $0x70] sm:$0xff]
        %v364 = vld [vmem:[#allocation9 + $0x78] sm:$0xff]
        %v365 = vld [vmem:[#allocation9 + $0x80] sm:$0xff]
        %v366 = vld [vmem:[#allocation9 + $0x88] sm:$0xff]
        %v367 = vld [vmem:[#allocation9 + $0x90] sm:$0xff]
        %v368 = vld [vmem:[#allocation9 + $0x98] sm:$0xff]
        %v369 = vld [vmem:[#allocation9 + $0xa0] sm:$0xff]
        %v370 = vld [vmem:[#allocation9 + $0xa8] sm:$0xff]
        %v371 = vld [vmem:[#allocation9 + $0xb0] sm:$0xff]
        %v372 = vld [vmem:[#allocation9 + $0xb8] sm:$0xff]
        %v373 = vld [vmem:[#allocation9 + $0xc0] sm:$0xff]
        %v374 = vld [vmem:[#allocation9 + $0xc8] sm:$0xff]
        %v375 = vld [vmem:[#allocation9 + $0xd0] sm:$0xff]
        %v376 = vld [vmem:[#allocation9 + $0xd8] sm:$0xff]
        %v377 = vld [vmem:[#allocation9 + $0xe0] sm:$0xff]
        %v378 = vld [vmem:[#allocation9 + $0xe8] sm:$0xff]
        %v379 = vld [vmem:[#allocation9 + $0xf0] sm:$0xff]
        %v380 = vld [vmem:[#allocation9 + $0xf8] sm:$0xff]
        %v381 = vld [vmem:[#allocation9 + $0x100] sm:$0xff]
        %v382 = vld [vmem:[#allocation9 + $0x108] sm:$0xff]
        %v383 = vld [vmem:[#allocation9 + $0x110] sm:$0xff]
        %v384 = vld [vmem:[#allocation9 + $0x118] sm:$0xff]
        %v385 = vld [vmem:[#allocation9 + $0x120] sm:$0xff]
        %v386 = vld [vmem:[#allocation9 + $0x128] sm:$0xff]
        %v387 = vld [vmem:[#allocation9 + $0x130] sm:$0xff]
        %v388 = vld [vmem:[#allocation9 + $0x138] sm:$0xff]
        %v389 = vld [vmem:[#allocation9 + $0x140] sm:$0xff]
        %v390 = vld [vmem:[#allocation9 + $0x148] sm:$0xff]
        %v391 = vld [vmem:[#allocation9 + $0x150] sm:$0xff]
        %v392 = vld [vmem:[#allocation9 + $0x158] sm:$0xff]
        %v393 = vld [vmem:[#allocation9 + $0x160] sm:$0xff]
        %v394 = vld [vmem:[#allocation9 + $0x168] sm:$0xff]
        %v395 = vld [vmem:[#allocation9 + $0x170] sm:$0xff]
        %v396 = vld [vmem:[#allocation9 + $0x178] sm:$0xff]
        %v397 = vld [vmem:[#allocation9 + $0x180] sm:$0xff]
        %v398 = vld [vmem:[#allocation9 + $0x188] sm:$0xff]
        %v399 = vld [vmem:[#allocation9 + $0x190] sm:$0xff]
        %v400 = vld [vmem:[#allocation9 + $0x198] sm:$0xff]
        %v401 = vld [vmem:[#allocation9 + $0x1a0] sm:$0xff]
        %v402 = vld [vmem:[#allocation9 + $0x1a8] sm:$0xff]
        %v403 = vld [vmem:[#allocation9 + $0x1b0] sm:$0xff]
        %v404 = vld [vmem:[#allocation9 + $0x1b8] sm:$0xff]
        %v405 = vld [vmem:[#allocation9 + $0x1c0] sm:$0xff]
        %v406 = vld [vmem:[#allocation9 + $0x1c8] sm:$0xff]
        %v407 = vld [vmem:[#allocation9 + $0x1d0] sm:$0xff]
        %v408 = vld [vmem:[#allocation9 + $0x1d8] sm:$0xff]
        %v409 = vld [vmem:[#allocation9 + $0x1e0] sm:$0xff]
        %v410 = vld [vmem:[#allocation9 + $0x1e8] sm:$0xff]
        %v411 = vld [vmem:[#allocation9 + $0x1f0] sm:$0xff]
        %v412 = vld [vmem:[#allocation9 + $0x1f8] sm:$0xff]
        %v413 = vld [vmem:[#allocation9 + $0x200] sm:$0xff]
        %v414 = vld [vmem:[#allocation9 + $0x208] sm:$0xff]
        %v415 = vld [vmem:[#allocation9 + $0x210] sm:$0xff]
        %v416 = vld [vmem:[#allocation9 + $0x218] sm:$0xff]
        %v417 = vld [vmem:[#allocation9 + $0x220] sm:$0xff]
        %v418 = vld [vmem:[#allocation9 + $0x228] sm:$0xff]
        %v419 = vld [vmem:[#allocation9 + $0x230] sm:$0xff]
        %v420 = vld [vmem:[#allocation9 + $0x238] sm:$0xff]
        %v421 = vld [vmem:[#allocation9 + $0x240] sm:$0xff]
        %v422 = vld [vmem:[#allocation9 + $0x248] sm:$0xff]
        %v423 = vld [vmem:[#allocation9 + $0x250] sm:$0xff]
        %v424 = vld [vmem:[#allocation9 + $0x258] sm:$0xff]
        %v425 = vld [vmem:[#allocation9 + $0x260] sm:$0xff]
        %v426 = vld [vmem:[#allocation9 + $0x268] sm:$0xff]
        %v427 = vld [vmem:[#allocation9 + $0x270] sm:$0xff]
        %v428 = vld [vmem:[#allocation9 + $0x278] sm:$0xff]
        %v429 = vld [vmem:[#allocation9 + $0x280] sm:$0xff]
        %v430 = vld [vmem:[#allocation9 + $0x288] sm:$0xff]
        %v431 = vld [vmem:[#allocation9 + $0x290] sm:$0xff]
        %v432 = vld [vmem:[#allocation9 + $0x298] sm:$0xff]
        %v433 = vld [vmem:[#allocation9 + $0x2a0] sm:$0xff]
        %v434 = vld [vmem:[#allocation9 + $0x2a8] sm:$0xff]
        %v435 = vld [vmem:[#allocation9 + $0x2b0] sm:$0xff]
        %v436 = vld [vmem:[#allocation9 + $0x2b8] sm:$0xff]
        %v437 = vld [vmem:[#allocation9 + $0x2c0] sm:$0xff]
        %v438 = vld [vmem:[#allocation9 + $0x2c8] sm:$0xff]
        %v439 = vld [vmem:[#allocation9 + $0x2d0] sm:$0xff]
        %v440 = vld [vmem:[#allocation9 + $0x2d8] sm:$0xff]
        %v441 = vld [vmem:[#allocation9 + $0x2e0] sm:$0xff]
        %v442 = vld [vmem:[#allocation9 + $0x2e8] sm:$0xff]
        %v443 = vld [vmem:[#allocation9 + $0x2f0] sm:$0xff]
        %v444 = vld [vmem:[#allocation9 + $0x2f8] sm:$0xff]
        %v445 = vld [vmem:[#allocation9 + $0x300] sm:$0xff]
        %v446 = vld [vmem:[#allocation9 + $0x308] sm:$0xff]
        %v447 = vld [vmem:[#allocation9 + $0x310] sm:$0xff]
        %v448 = vld [vmem:[#allocation9 + $0x318] sm:$0xff]
        %v449 = vld [vmem:[#allocation9 + $0x320] sm:$0xff]
        %v450 = vld [vmem:[#allocation9 + $0x328] sm:$0xff]
        %v451 = vld [vmem:[#allocation9 + $0x330] sm:$0xff]
        %v452 = vld [vmem:[#allocation9 + $0x338] sm:$0xff]
        %v453 = vld [vmem:[#allocation9 + $0x340] sm:$0xff]
        %v454 = vld [vmem:[#allocation9 + $0x348] sm:$0xff]
        %v455 = vld [vmem:[#allocation9 + $0x350] sm:$0xff]
        %v456 = vld [vmem:[#allocation9 + $0x358] sm:$0xff]
        %v457 = vld [vmem:[#allocation9 + $0x360] sm:$0xff]
        %v458 = vld [vmem:[#allocation9 + $0x368] sm:$0xff]
        %v459 = vld [vmem:[#allocation9 + $0x370] sm:$0xff]
        %v460 = vld [vmem:[#allocation9 + $0x378] sm:$0xff]
        %v461 = vld [vmem:[#allocation9 + $0x380] sm:$0xff]
        %v462 = vld [vmem:[#allocation9 + $0x388] sm:$0xff]
        %v463 = vld [vmem:[#allocation9 + $0x390] sm:$0xff]
        %v464 = vld [vmem:[#allocation9 + $0x398] sm:$0xff]
        %v465 = vld [vmem:[#allocation9 + $0x3a0] sm:$0xff]
        %v466 = vld [vmem:[#allocation9 + $0x3a8] sm:$0xff]
        %v467 = vld [vmem:[#allocation9 + $0x3b0] sm:$0xff]
        %v468 = vld [vmem:[#allocation9 + $0x3b8] sm:$0xff]
        %v469 = vld [vmem:[#allocation9 + $0x3c0] sm:$0xff]
        %v470 = vld [vmem:[#allocation9 + $0x3c8] sm:$0xff]
        %v471 = vld [vmem:[#allocation9 + $0x3d0] sm:$0xff]
        %v472 = vld [vmem:[#allocation9 + $0x3d8] sm:$0xff]
        %v473 = vld [vmem:[#allocation9 + $0x3e0] sm:$0xff]
        %v474 = vld [vmem:[#allocation9 + $0x3e8] sm:$0xff]
        %v475 = vld [vmem:[#allocation9 + $0x3f0] sm:$0xff]
        %v476 = vld [vmem:[#allocation9 + $0x3f8] sm:$0xff]
        %v477 = vld [vmem:[%s4] sm:$0x1]
        %v479 = vlaneseq
        %v480 = vshrl.u32 %v479, 7
        %v481 = vsub.s32 0, %v480
        %v482 = vrot.slane %v477, %v481
        %484 = vmatprep.subr.mxu0 0.0
        %485 = vmatpush1.msra.mxu0 %v349
        %486 = vmatprep.subr.mxu0 0.0
        %487 = vmatpush1.msra.mxu0 %v350
        %488 = vmatprep.subr.mxu0 0.0
        %489 = vmatpush1.msra.mxu0 %v351
        %490 = vmatprep.subr.mxu0 0.0
        %491 = vmatpush1.msra.mxu0 %v352
        %492 = vmatprep.subr.mxu0 0.0
        %493 = vmatpush1.msra.mxu0 %v353
        %494 = vmatprep.subr.mxu0 0.0
        %495 = vmatpush1.msra.mxu0 %v354
        %496 = vmatprep.subr.mxu0 0.0
        %497 = vmatpush1.msra.mxu0 %v355
        %498 = vmatprep.subr.mxu0 0.0
        %499 = vmatpush1.msra.mxu0 %v356
        %500 = vmatprep.subr.mxu0 0.0
        %501 = vmatpush1.msra.mxu0 %v357
        %502 = vmatprep.subr.mxu0 0.0
        %503 = vmatpush1.msra.mxu0 %v358
        %504 = vmatprep.subr.mxu0 0.0
        %505 = vmatpush1.msra.mxu0 %v359
        %506 = vmatprep.subr.mxu0 0.0
        %507 = vmatpush1.msra.mxu0 %v360
        %508 = vmatprep.subr.mxu0 0.0
        %509 = vmatpush1.msra.mxu0 %v361
        %510 = vmatprep.subr.mxu0 0.0
        %511 = vmatpush1.msra.mxu0 %v362
        %512 = vmatprep.subr.mxu0 0.0
        %513 = vmatpush1.msra.mxu0 %v363
        %514 = vmatprep.subr.mxu0 0.0
        %515 = vmatpush1.msra.mxu0 %v364
        %516 = vmatprep.subr.mxu0 0.0
        %517 = vmatpush1.msra.mxu0 %v365
        %518 = vmatprep.subr.mxu0 0.0
        %519 = vmatpush1.msra.mxu0 %v366
        %520 = vmatprep.subr.mxu0 0.0
        %521 = vmatpush1.msra.mxu0 %v367
        %522 = vmatprep.subr.mxu0 0.0
        %523 = vmatpush1.msra.mxu0 %v368
        %524 = vmatprep.subr.mxu0 0.0
        %525 = vmatpush1.msra.mxu0 %v369
        %526 = vmatprep.subr.mxu0 0.0
        %527 = vmatpush1.msra.mxu0 %v370
        %528 = vmatprep.subr.mxu0 0.0
        %529 = vmatpush1.msra.mxu0 %v371
        %530 = vmatprep.subr.mxu0 0.0
        %531 = vmatpush1.msra.mxu0 %v372
        %532 = vmatprep.subr.mxu0 0.0
        %533 = vmatpush1.msra.mxu0 %v373
        %534 = vmatprep.subr.mxu0 0.0
        %535 = vmatpush1.msra.mxu0 %v374
        %536 = vmatprep.subr.mxu0 0.0
        %537 = vmatpush1.msra.mxu0 %v375
        %538 = vmatprep.subr.mxu0 0.0
        %539 = vmatpush1.msra.mxu0 %v376
        %540 = vmatprep.subr.mxu0 0.0
        %541 = vmatpush1.msra.mxu0 %v377
        %542 = vmatprep.subr.mxu0 0.0
        %543 = vmatpush1.msra.mxu0 %v378
        %544 = vmatprep.subr.mxu0 0.0
        %545 = vmatpush1.msra.mxu0 %v379
        %546 = vmatprep.subr.mxu0 0.0
        %547 = vmatpush1.msra.mxu0 %v380
        %548 = vmatprep.mubr.f32.mxu0 %v342
        %549 = vmatmul.mubr.f32.gmra.mrb[0].mxu0 %v341
        %v550 = vpop.f32.mrb[0].mxu0
        %v551 = vadd.f32 %v482, %v550
        %v552 = vpop.f32.mrb[0].mxu0
        %553 = vdwg.mxu0
        %554 = vmatprep.subr.mxu0 0.0
        %555 = vmatpush1.msra.mxu0 %v381
        %556 = vmatprep.subr.mxu0 0.0
        %557 = vmatpush1.msra.mxu0 %v382
        %558 = vmatprep.subr.mxu0 0.0
        %559 = vmatpush1.msra.mxu0 %v383
        %560 = vmatprep.subr.mxu0 0.0
        %561 = vmatpush1.msra.mxu0 %v384
        %562 = vmatprep.subr.mxu0 0.0
        %563 = vmatpush1.msra.mxu0 %v385
        %564 = vmatprep.subr.mxu0 0.0
        %565 = vmatpush1.msra.mxu0 %v386
        %566 = vmatprep.subr.mxu0 0.0
        %567 = vmatpush1.msra.mxu0 %v387
        %568 = vmatprep.subr.mxu0 0.0
        %569 = vmatpush1.msra.mxu0 %v388
        %570 = vmatprep.subr.mxu0 0.0
        %571 = vmatpush1.msra.mxu0 %v389
        %572 = vmatprep.subr.mxu0 0.0
        %573 = vmatpush1.msra.mxu0 %v390
        %574 = vmatprep.subr.mxu0 0.0
        %575 = vmatpush1.msra.mxu0 %v391
        %576 = vmatprep.subr.mxu0 0.0
        %577 = vmatpush1.msra.mxu0 %v392
        %578 = vmatprep.subr.mxu0 0.0
        %579 = vmatpush1.msra.mxu0 %v393
        %580 = vmatprep.subr.mxu0 0.0
        %581 = vmatpush1.msra.mxu0 %v394
        %582 = vmatprep.subr.mxu0 0.0
        %583 = vmatpush1.msra.mxu0 %v395
        %584 = vmatprep.subr.mxu0 0.0
        %585 = vmatpush1.msra.mxu0 %v396
        %586 = vmatprep.subr.mxu0 0.0
        %587 = vmatpush1.msra.mxu0 %v397
        %588 = vmatprep.subr.mxu0 0.0
        %589 = vmatpush1.msra.mxu0 %v398
        %590 = vmatprep.subr.mxu0 0.0
        %591 = vmatpush1.msra.mxu0 %v399
        %592 = vmatprep.subr.mxu0 0.0
        %593 = vmatpush1.msra.mxu0 %v400
        %594 = vmatprep.subr.mxu0 0.0
        %595 = vmatpush1.msra.mxu0 %v401
        %596 = vmatprep.subr.mxu0 0.0
        %597 = vmatpush1.msra.mxu0 %v402
        %598 = vmatprep.subr.mxu0 0.0
        %599 = vmatpush1.msra.mxu0 %v403
        %600 = vmatprep.subr.mxu0 0.0
        %601 = vmatpush1.msra.mxu0 %v404
        %602 = vmatprep.subr.mxu0 0.0
        %603 = vmatpush1.msra.mxu0 %v405
        %604 = vmatprep.subr.mxu0 0.0
        %605 = vmatpush1.msra.mxu0 %v406
        %606 = vmatprep.subr.mxu0 0.0
        %607 = vmatpush1.msra.mxu0 %v407
        %608 = vmatprep.subr.mxu0 0.0
        %609 = vmatpush1.msra.mxu0 %v408
        %610 = vmatprep.subr.mxu0 0.0
        %611 = vmatpush1.msra.mxu0 %v409
        %612 = vmatprep.subr.mxu0 0.0
        %613 = vmatpush1.msra.mxu0 %v410
        %614 = vmatprep.subr.mxu0 0.0
        %615 = vmatpush1.msra.mxu0 %v411
        %616 = vmatprep.subr.mxu0 0.0
        %617 = vmatpush1.msra.mxu0 %v412
        %618 = vmatprep.mubr.f32.mxu0 %v344
        %619 = vmatmul.mubr.f32.gmra.mrb[0].mxu0 %v343
        %v620 = vpop.f32.mrb[0].mxu0
        %v621 = vadd.f32 %v551, %v620
        %v622 = vpop.f32.mrb[0].mxu0
        %623 = vdwg.mxu0
        %624 = vmatprep.subr.mxu0 0.0
        %625 = vmatpush1.msra.mxu0 %v413
        %626 = vmatprep.subr.mxu0 0.0
        %627 = vmatpush1.msra.mxu0 %v414
        %628 = vmatprep.subr.mxu0 0.0
        %629 = vmatpush1.msra.mxu0 %v415
        %630 = vmatprep.subr.mxu0 0.0
        %631 = vmatpush1.msra.mxu0 %v416
        %632 = vmatprep.subr.mxu0 0.0
        %633 = vmatpush1.msra.mxu0 %v417
        %634 = vmatprep.subr.mxu0 0.0
        %635 = vmatpush1.msra.mxu0 %v418
        %636 = vmatprep.subr.mxu0 0.0
        %637 = vmatpush1.msra.mxu0 %v419
        %638 = vmatprep.subr.mxu0 0.0
        %639 = vmatpush1.msra.mxu0 %v420
        %640 = vmatprep.subr.mxu0 0.0
        %641 = vmatpush1.msra.mxu0 %v421
        %642 = vmatprep.subr.mxu0 0.0
        %643 = vmatpush1.msra.mxu0 %v422
        %644 = vmatprep.subr.mxu0 0.0
        %645 = vmatpush1.msra.mxu0 %v423
        %646 = vmatprep.subr.mxu0 0.0
        %647 = vmatpush1.msra.mxu0 %v424
        %648 = vmatprep.subr.mxu0 0.0
        %649 = vmatpush1.msra.mxu0 %v425
        %650 = vmatprep.subr.mxu0 0.0
        %651 = vmatpush1.msra.mxu0 %v426
        %652 = vmatprep.subr.mxu0 0.0
        %653 = vmatpush1.msra.mxu0 %v427
        %654 = vmatprep.subr.mxu0 0.0
        %655 = vmatpush1.msra.mxu0 %v428
        %656 = vmatprep.subr.mxu0 0.0
        %657 = vmatpush1.msra.mxu0 %v429
        %658 = vmatprep.subr.mxu0 0.0
        %659 = vmatpush1.msra.mxu0 %v430
        %660 = vmatprep.subr.mxu0 0.0
        %661 = vmatpush1.msra.mxu0 %v431
        %662 = vmatprep.subr.mxu0 0.0
        %663 = vmatpush1.msra.mxu0 %v432
        %664 = vmatprep.subr.mxu0 0.0
        %665 = vmatpush1.msra.mxu0 %v433
        %666 = vmatprep.subr.mxu0 0.0
        %667 = vmatpush1.msra.mxu0 %v434
        %668 = vmatprep.subr.mxu0 0.0
        %669 = vmatpush1.msra.mxu0 %v435
        %670 = vmatprep.subr.mxu0 0.0
        %671 = vmatpush1.msra.mxu0 %v436
        %672 = vmatprep.subr.mxu0 0.0
        %673 = vmatpush1.msra.mxu0 %v437
        %674 = vmatprep.subr.mxu0 0.0
        %675 = vmatpush1.msra.mxu0 %v438
        %676 = vmatprep.subr.mxu0 0.0
        %677 = vmatpush1.msra.mxu0 %v439
        %678 = vmatprep.subr.mxu0 0.0
        %679 = vmatpush1.msra.mxu0 %v440
        %680 = vmatprep.subr.mxu0 0.0
        %681 = vmatpush1.msra.mxu0 %v441
        %682 = vmatprep.subr.mxu0 0.0
        %683 = vmatpush1.msra.mxu0 %v442
        %684 = vmatprep.subr.mxu0 0.0
        %685 = vmatpush1.msra.mxu0 %v443
        %686 = vmatprep.subr.mxu0 0.0
        %687 = vmatpush1.msra.mxu0 %v444
        %688 = vmatprep.mubr.f32.mxu0 %v346
        %689 = vmatmul.mubr.f32.gmra.mrb[0].mxu0 %v345
        %v690 = vpop.f32.mrb[0].mxu0
        %v691 = vadd.f32 %v621, %v690
        %v692 = vpop.f32.mrb[0].mxu0
        %693 = vdwg.mxu0
        %694 = vmatprep.subr.mxu0 0.0
        %695 = vmatpush1.msra.mxu0 %v445
        %696 = vmatprep.subr.mxu0 0.0
        %697 = vmatpush1.msra.mxu0 %v446
        %698 = vmatprep.subr.mxu0 0.0
        %699 = vmatpush1.msra.mxu0 %v447
        %700 = vmatprep.subr.mxu0 0.0
        %701 = vmatpush1.msra.mxu0 %v448
        %702 = vmatprep.subr.mxu0 0.0
        %703 = vmatpush1.msra.mxu0 %v449
        %704 = vmatprep.subr.mxu0 0.0
        %705 = vmatpush1.msra.mxu0 %v450
        %706 = vmatprep.subr.mxu0 0.0
        %707 = vmatpush1.msra.mxu0 %v451
        %708 = vmatprep.subr.mxu0 0.0
        %709 = vmatpush1.msra.mxu0 %v452
        %710 = vmatprep.subr.mxu0 0.0
        %711 = vmatpush1.msra.mxu0 %v453
        %712 = vmatprep.subr.mxu0 0.0
        %713 = vmatpush1.msra.mxu0 %v454
        %714 = vmatprep.subr.mxu0 0.0
        %715 = vmatpush1.msra.mxu0 %v455
        %716 = vmatprep.subr.mxu0 0.0
        %717 = vmatpush1.msra.mxu0 %v456
        %718 = vmatprep.subr.mxu0 0.0
        %719 = vmatpush1.msra.mxu0 %v457
        %720 = vmatprep.subr.mxu0 0.0
        %721 = vmatpush1.msra.mxu0 %v458
        %722 = vmatprep.subr.mxu0 0.0
        %723 = vmatpush1.msra.mxu0 %v459
        %724 = vmatprep.subr.mxu0 0.0
        %725 = vmatpush1.msra.mxu0 %v460
        %726 = vmatprep.subr.mxu0 0.0
        %727 = vmatpush1.msra.mxu0 %v461
        %728 = vmatprep.subr.mxu0 0.0
        %729 = vmatpush1.msra.mxu0 %v462
        %730 = vmatprep.subr.mxu0 0.0
        %731 = vmatpush1.msra.mxu0 %v463
        %732 = vmatprep.subr.mxu0 0.0
        %733 = vmatpush1.msra.mxu0 %v464
        %734 = vmatprep.subr.mxu0 0.0
        %735 = vmatpush1.msra.mxu0 %v465
        %736 = vmatprep.subr.mxu0 0.0
        %737 = vmatpush1.msra.mxu0 %v466
        %738 = vmatprep.subr.mxu0 0.0
        %739 = vmatpush1.msra.mxu0 %v467
        %740 = vmatprep.subr.mxu0 0.0
        %741 = vmatpush1.msra.mxu0 %v468
        %742 = vmatprep.subr.mxu0 0.0
        %743 = vmatpush1.msra.mxu0 %v469
        %744 = vmatprep.subr.mxu0 0.0
        %745 = vmatpush1.msra.mxu0 %v470
        %746 = vmatprep.subr.mxu0 0.0
        %747 = vmatpush1.msra.mxu0 %v471
        %748 = vmatprep.subr.mxu0 0.0
        %749 = vmatpush1.msra.mxu0 %v472
        %750 = vmatprep.subr.mxu0 0.0
        %751 = vmatpush1.msra.mxu0 %v473
        %752 = vmatprep.subr.mxu0 0.0
        %753 = vmatpush1.msra.mxu0 %v474
        %754 = vmatprep.subr.mxu0 0.0
        %755 = vmatpush1.msra.mxu0 %v475
        %756 = vmatprep.subr.mxu0 0.0
        %757 = vmatpush1.msra.mxu0 %v476
        %758 = vmatprep.mubr.f32.mxu0 %v348
        %759 = vmatmul.mubr.f32.gmra.mrb[0].mxu0 %v347
        %v760 = vpop.f32.mrb[0].mxu0
        %v761 = vadd.f32 %v691, %v760
        %v762 = vpop.f32.mrb[0].mxu0
        %763 = vdwg.mxu0
        %764 = vst [vmem:[%s304] sm:$0xff] %v761
        %s765 = sand.u32 %s149, 1
        %s766 = scalar_lea.sflag [#allocation4], %s765
        %s767 = sand.u32 %s149, 1
        %s768 = smul.addr %s767, 8
        %s769 = scalar_lea.vmem [#allocation10], %s768
        // Predicated region
        $region57: #{tpu_custom_call.1} parent=39 // pred_check
          %p770 = pneg %p159
        $region58: #{tpu_custom_call.1} parent=39 // pred_check_branch
          %772 = sbr.rel (%p770) target = $region60
        $region59: #{tpu_custom_call.1} parent=39 // pred_region
          %s774 = ssub.s32 128, 128
          %775 = vsyncadd %s766, %s774
          %s776 = smul.addr %s26, 128
          %s777 = scalar_lea.hbm %s5, %s776
          %s779 = sshll.u32 %s769, 4
          %s780 = int_to_ptr.vmem [resolvable:$true] %s779
          %782 = dma.vmem_to_hbm [thread:$0]  %s780, 128, %s777, %s766
        $region60: #{tpu_custom_call.1} parent=39 // pred_fallthru
          _
      $region40: #{tpu_custom_call.1} parent=5 // pred_fallthru
        _
      %p783 = scmp.le.s32.totalorder 2, %s21
      // Predicated region
      $region61: #{tpu_custom_call.1} parent=5 // pred_check
        %p784 = pneg %p783
      $region62: #{tpu_custom_call.1} parent=5 // pred_check_branch
        %786 = sbr.rel (%p784) target = $region64
      $region63: #{tpu_custom_call.1} parent=5 // pred_region
        %s787 = ssub.s32 %s21, 2
        // Predicated region
        $region65: #{tpu_custom_call.1} parent=63 // pred_check
          %p788 = pneg %p165
        $region66: #{tpu_custom_call.1} parent=63 // pred_check_branch
          %790 = sbr.rel (%p788) target = $region68
        $region67: #{tpu_custom_call.1} parent=63 // pred_region
          %s791 = sand.u32 %s150, 1
          %s792 = scalar_lea.sflag [#allocation4], %s791
          %s793 = sand.u32 %s150, 1
          %s794 = smul.addr %s793, 8
          %s795 = scalar_lea.vmem [#allocation10], %s794
          %796 = dma.done %s792, 128
        $region68: #{tpu_custom_call.1} parent=63 // pred_fallthru
          _
      $region64: #{tpu_custom_call.1} parent=5 // pred_fallthru
        _
    $region6: #{tpu_custom_call.1} parent=1 // loop_footer
      %s25 = sadd.s32 1, %s21
    $region7: #{tpu_custom_call.1} parent=1 // loop_footer_branch
      %20 = sbr.rel target = $region3
    $region8: #{tpu_custom_call.1} parent=1 // loop_exit
      _
    %797 = vsyncpa [#allocation3], 1
    %s798 = scalar_lea.sflag [#allocation3], 1
    %799 = vsyncpa %s798, 1
    %800 = vsyncpa [#allocation8], 1
    %s801 = scalar_lea.sflag [#allocation8], 1
    %802 = vsyncpa %s801, 1
    %803 = vsyncpa [#allocation4], 1
    %s804 = scalar_lea.sflag [#allocation4], 1
    %805 = vsyncpa %s804, 1
    %806 = vsyncpa [#allocation5], 1
    %s807 = scalar_lea.sflag [#allocation5], 1
    %808 = vsyncpa %s807, 1

</llo_original>
